<compile_context>
chip_gen: v7x
topology: tpu7x:2x2x1
jax: 0.10.0
libtpu: 0.0.40
codegen_flags: <defaults>
</compile_context>

<pallas_src>
import functools

import jax
import jax.numpy as jnp
from jax.experimental import pallas as pl
from jax.experimental.pallas import tpu as pltpu


# ------------------------------------------------------------------ helpers

def _round_up(x, m):
    return ((x + m - 1) // m) * m


def _vmem_capacity_bytes():
    try:
        return int(pltpu.get_tpu_info().vmem_capacity_bytes)
    except Exception:
        return 64 * 1024 * 1024  # conservative (v7x per-TC physical VMEM)


def _pick_row_tile(e, c, dtype, block_rows):
    """Row-tile size: big (amortize ~0.35us/step) but v5e-safe (16 MiB scoped VMEM)."""
    itemsize = jnp.dtype(dtype).itemsize
    budget = 8 * 1024 * 1024                      # double-buffered in+out tile budget
    per_row = 2 * c * (itemsize + 4)              # 2x buffering * (native-in + f32-out) row
    cap = max(8, (budget // max(per_row, 1)) // 8 * 8)
    tm = min(_round_up(block_rows, 8), cap, _round_up(e, 8))
    return max(8, tm)


# ------------------------------------------------------------------ kernels

def _bn_train_fused_kernel(x_ref, gamma_ref, beta_ref, o_ref, *, inv_n, eps):
    """Whole edge_attr resident in VMEM: batch stats + normalize in one launch.

    Works directly on the logical (E, C) view (no padding); `centered` is never
    materialized so peak VMEM is ~ input + output.
    """
    x = x_ref[...].astype(jnp.float32)                        # (E, C)
    mean = jnp.sum(x, axis=0, keepdims=True) * inv_n          # (1, C)
    ex2 = jnp.sum(x * x, axis=0, keepdims=True) * inv_n       # (1, C)
    var = jnp.maximum(ex2 - mean * mean, 0.0)                 # biased variance
    scale = gamma_ref[...] * jax.lax.rsqrt(var + eps)         # EUP rsqrt, no divide
    shift = beta_ref[...] - mean * scale
    o_ref[...] = (x * scale + shift).astype(o_ref.dtype)


def _bn_stats_kernel(x_ref, stats_ref, *, tm, e):
    """Tiled reduction: per-channel [sum; sum of squares] into a resident (2, C) block.

    Grid = (parts, row_blocks_per_part); the parts axis is "parallel" (v7x dual-TC),
    each part accumulates its own (2, C) partial. Tail / duplicated blocks are masked
    out via the global row index.
    """
    p = pl.program_id(0)
    j = pl.program_id(1)

    @pl.when(j == 0)
    def _init():
        stats_ref[...] = jnp.zeros_like(stats_ref)

    blk = p * pl.num_programs(1) + j                          # global row-block id
    row0 = blk * tm
    rows = row0 + jax.lax.broadcasted_iota(jnp.int32, (tm, 1), 0)
    valid = rows < e                                          # masks tail + clamped blocks
    x = jnp.where(valid, x_ref[...].astype(jnp.float32), 0.0)
    stats_ref[0:1, :] += jnp.sum(x, axis=0, keepdims=True)
    stats_ref[1:2, :] += jnp.sum(x * x, axis=0, keepdims=True)


def _bn_apply_kernel(x_ref, scale_ref, shift_ref, o_ref):
    """Per-channel affine (folded BN): y = x * scale + shift (native dtype I/O)."""
    x = x_ref[...].astype(jnp.float32)
    o_ref[...] = (x * scale_ref[...] + shift_ref[...]).astype(o_ref.dtype)


# ------------------------------------------------------------------ wrappers

def _apply_affine(x, scale, shift, tm):
    """Row-tiled y = x * scale + shift; partial tail block, no padding, no slicing."""
    e, c = x.shape
    return pl.pallas_call(
        _bn_apply_kernel,
        out_shape=jax.ShapeDtypeStruct((e, c), x.dtype),
        grid=(pl.cdiv(e, tm),),
        in_specs=[
            pl.BlockSpec((tm, c), lambda i: (i, 0)),
            pl.BlockSpec((1, c), lambda i: (0, 0)),   # grid-invariant resident params
            pl.BlockSpec((1, c), lambda i: (0, 0)),
        ],
        out_specs=pl.BlockSpec((tm, c), lambda i: (i, 0)),
        compiler_params=pltpu.CompilerParams(dimension_semantics=("parallel",)),
    )(x, scale, shift)


def _batch_stats(x, tm, num_parts):
    """Pass 1: per-channel [sum; sumsq] over rows, sharded across `num_parts` partials."""
    e, c = x.shape
    nb = pl.cdiv(e, tm)
    num_parts = max(1, min(num_parts, nb))
    nbh = pl.cdiv(nb, num_parts)

    def x_map(p, j):
        # Clamp so a (fully masked) extra block never DMAs past the array end.
        return (jnp.minimum(p * nbh + j, nb - 1), 0)

    stats = pl.pallas_call(
        functools.partial(_bn_stats_kernel, tm=tm, e=e),
        out_shape=jax.ShapeDtypeStruct((num_parts, 2, c), jnp.float32),
        grid=(num_parts, nbh),
        in_specs=[pl.BlockSpec((tm, c), x_map)],
        out_specs=pl.BlockSpec((None, 2, c), lambda p, j: (p, 0, 0)),
        compiler_params=pltpu.CompilerParams(
            dimension_semantics=("parallel", "arbitrary")),
    )(x)
    return jnp.sum(stats, axis=0)                             # (2, C)


def batchnorm1d_edge(edge_attr, gamma, beta, running_mean=None, running_var=None,
                     *, eps=1e-5, training=True, block_rows=2048,
                     fused_bytes_limit=None, num_stat_parts=2):
    """Forward of BatchNorm1dEdge applied to edge_attr of shape (num_edges, C)."""
    e, c = edge_attr.shape
    gamma2 = jnp.asarray(gamma, jnp.float32).reshape(1, c)
    beta2 = jnp.asarray(beta, jnp.float32).reshape(1, c)
    tm = _pick_row_tile(e, c, edge_attr.dtype, block_rows)

    if not training:
        rm = (jnp.zeros((c,), jnp.float32) if running_mean is None
              else jnp.asarray(running_mean, jnp.float32)).reshape(1, c)
        rv = (jnp.ones((c,), jnp.float32) if running_var is None
              else jnp.asarray(running_var, jnp.float32)).reshape(1, c)
        scale = gamma2 * jax.lax.rsqrt(rv + eps)
        shift = beta2 - rm * scale
        return _apply_affine(edge_attr, scale, shift, tm)

    # ---- training mode: per-channel batch statistics over the edge dimension ----
    tensor_f32_bytes = e * c * 4
    vmem_cap = _vmem_capacity_bytes()
    if fused_bytes_limit is None:
        # Keep fused peak (~input + f32 work + output) within half of physical VMEM.
        fused_bytes_limit = max(0, (vmem_cap // 2 - (2 << 20)) // 3)

    if tensor_f32_bytes <= fused_bytes_limit:
        # Whole tensor VMEM-resident: single launch, one HBM read + one HBM write.
        kernel = functools.partial(
            _bn_train_fused_kernel, inv_n=1.0 / e, eps=float(eps))
        vmem_limit = int(min(vmem_cap, 3 * tensor_f32_bytes + (8 << 20)))
        return pl.pallas_call(
            kernel,
            out_shape=jax.ShapeDtypeStruct((e, c), edge_attr.dtype),
            compiler_params=pltpu.CompilerParams(vmem_limit_bytes=vmem_limit),
        )(edge_attr, gamma2, beta2)

    # Large edge counts: pass 1 = tiled sum / sum-of-squares reduction (dual-TC capable),
    # pass 2 = tiled affine apply with folded scale/shift. Exactly 2 reads + 1 write.
    stats = _batch_stats(edge_attr, tm, num_stat_parts)
    mean = stats[0:1, :] * (1.0 / e)
    var = jnp.maximum(stats[1:2, :] * (1.0 / e) - mean * mean, 0.0)
    scale = gamma2 * jax.lax.rsqrt(var + eps)
    shift = beta2 - mean * scale
    return _apply_affine(edge_attr, scale, shift, tm)


# ------------------------------------------------------------------ references

def reference_bn_train(x, gamma, beta, eps):
    x = x.astype(jnp.float32)
    mean = jnp.mean(x, axis=0, keepdims=True)
    var = jnp.mean((x - mean) ** 2, axis=0, keepdims=True)    # biased, like torch BN norm
    return (x - mean) / jnp.sqrt(var + eps) * gamma.reshape(1, -1) + beta.reshape(1, -1)


def reference_bn_eval(x, gamma, beta, eps):
    # default running_mean = 0, running_var = 1
    return x.astype(jnp.float32) * (gamma.reshape(1, -1) / jnp.sqrt(1.0 + eps)) \
        + beta.reshape(1, -1)


# ------------------------------------------------------------------ main

if __name__ == "__main__":
    NUM_EDGES = 1003          # deliberately not a multiple of 8 / the row tile
    CHANNELS = 128            # lane-dense feature dim
    EPS = 1e-5

    key = jax.random.PRNGKey(0)
    k1, k2, k3 = jax.random.split(key, 3)
    edge_attr = jax.random.normal(k1, (NUM_EDGES, CHANNELS), jnp.float32) * 2.0 + 0.5
    gamma = 1.0 + 0.1 * jax.random.normal(k2, (CHANNELS,), jnp.float32)
    beta = 0.1 * jax.random.normal(k3, (CHANNELS,), jnp.float32)

    ref = reference_bn_train(edge_attr, gamma, beta, EPS)

    # training-mode forward (module default): fused single-launch path
    out = jax.block_until_ready(
        batchnorm1d_edge(edge_attr, gamma, beta, training=True, eps=EPS))
    assert out.shape == (NUM_EDGES, CHANNELS), out.shape
    assert jnp.allclose(out, ref, atol=1e-4, rtol=1e-4), \
        float(jnp.max(jnp.abs(out - ref)))

    # force the tiled two-pass path (even number of row blocks, masked tail rows)
    out_tiled = jax.block_until_ready(
        batchnorm1d_edge(edge_attr, gamma, beta, training=True, eps=EPS,
                         block_rows=256, fused_bytes_limit=0))
    assert jnp.allclose(out_tiled, ref, atol=1e-4, rtol=1e-4), \
        float(jnp.max(jnp.abs(out_tiled - ref)))

    # tiled path with an odd block count (exercises the clamped, fully-masked
    # duplicate block on the 2-way parallel stats grid)
    out_tiled2 = jax.block_until_ready(
        batchnorm1d_edge(edge_attr, gamma, beta, training=True, eps=EPS,
                         block_rows=384, fused_bytes_limit=0))
    assert jnp.allclose(out_tiled2, ref, atol=1e-4, rtol=1e-4), \
        float(jnp.max(jnp.abs(out_tiled2 - ref)))

    # eval-mode forward (running stats: defaults running_mean=0, running_var=1)
    out_eval = jax.block_until_ready(
        batchnorm1d_edge(edge_attr, gamma, beta, training=False, eps=EPS))
    ref_eval = reference_bn_eval(edge_attr, gamma, beta, EPS)
    assert jnp.allclose(out_eval, ref_eval, atol=1e-4, rtol=1e-4), \
        float(jnp.max(jnp.abs(out_eval - ref_eval)))

    print("KERNEL_OK")
</pallas_src>

<mosaic_0001>
module attributes {stable_mosaic.version = 11 : i64} {
  func.func @_bn_train_fused_kernel(%arg0: memref<1003x128xf32, #tpu.memory_space<vmem>>, %arg1: memref<1x128xf32, #tpu.memory_space<vmem>>, %arg2: memref<1x128xf32, #tpu.memory_space<vmem>>, %arg3: memref<1003x128xf32, #tpu.memory_space<vmem>>) attributes {dimension_semantics = [], scalar_prefetch = 0 : i64, scratch_operands = 0 : i64, tpu.core_type = #tpu.core_type<tc>} {
    %c0 = arith.constant 0 : index
    %c0_0 = arith.constant 0 : index
    %0 = vector.load %arg0[%c0, %c0_0] : memref<1003x128xf32, #tpu.memory_space<vmem>>, vector<1003x128xf32>
    %cst = arith.constant dense<0.000000e+00> : vector<128xf32>
    %1 = vector.multi_reduction <add>, %0, %cst [0] : vector<1003x128xf32> to vector<128xf32>
    %2 = vector.shape_cast %1 : vector<128xf32> to vector<1x128xf32>
    %cst_1 = arith.constant 9.97008988E-4 : f32
    %3 = vector.broadcast %cst_1 : f32 to vector<1x128xf32>
    %4 = arith.mulf %2, %3 : vector<1x128xf32>
    %5 = arith.mulf %0, %0 : vector<1003x128xf32>
    %cst_2 = arith.constant dense<0.000000e+00> : vector<128xf32>
    %6 = vector.multi_reduction <add>, %5, %cst_2 [0] : vector<1003x128xf32> to vector<128xf32>
    %7 = vector.shape_cast %6 : vector<128xf32> to vector<1x128xf32>
    %cst_3 = arith.constant 9.97008988E-4 : f32
    %8 = vector.broadcast %cst_3 : f32 to vector<1x128xf32>
    %9 = arith.mulf %7, %8 : vector<1x128xf32>
    %10 = arith.mulf %4, %4 : vector<1x128xf32>
    %11 = arith.subf %9, %10 : vector<1x128xf32>
    %cst_4 = arith.constant 0.000000e+00 : f32
    %12 = vector.broadcast %cst_4 : f32 to vector<1x128xf32>
    %13 = arith.maximumf %11, %12 : vector<1x128xf32>
    %c0_5 = arith.constant 0 : index
    %c0_6 = arith.constant 0 : index
    %14 = vector.load %arg1[%c0_5, %c0_6] : memref<1x128xf32, #tpu.memory_space<vmem>>, vector<1x128xf32>
    %cst_7 = arith.constant 9.99999974E-6 : f32
    %15 = vector.broadcast %cst_7 : f32 to vector<1x128xf32>
    %16 = arith.addf %13, %15 : vector<1x128xf32>
    %17 = math.rsqrt %16 : vector<1x128xf32>
    %18 = arith.mulf %14, %17 : vector<1x128xf32>
    %c0_8 = arith.constant 0 : index
    %c0_9 = arith.constant 0 : index
    %19 = vector.load %arg2[%c0_8, %c0_9] : memref<1x128xf32, #tpu.memory_space<vmem>>, vector<1x128xf32>
    %20 = arith.mulf %4, %18 : vector<1x128xf32>
    %21 = arith.subf %19, %20 : vector<1x128xf32>
    %22 = vector.broadcast %18 : vector<1x128xf32> to vector<1003x128xf32>
    %23 = arith.mulf %0, %22 : vector<1003x128xf32>
    %24 = vector.broadcast %21 : vector<1x128xf32> to vector<1003x128xf32>
    %25 = arith.addf %23, %24 : vector<1003x128xf32>
    %c0_10 = arith.constant 0 : index
    %c0_11 = arith.constant 0 : index
    %26 = vector.load %arg3[%c0_10, %c0_11] : memref<1003x128xf32, #tpu.memory_space<vmem>>, vector<1003x128xf32>
    tpu.vector_store %arg3[%c0_10, %c0_11], %25 {strides = array<i32>} : memref<1003x128xf32, #tpu.memory_space<vmem>>, vector<1003x128xf32>,
    return
  }
}

</mosaic_0001>

<llo_original>
// kernel: tpu_custom_call.1
$region0: #{tpu_custom_call.1}
  #allocation0 [shape = 'u32[]', space=smem, size = 0x4, offset = 0x4, fixed_abs, tag = 'smem constant byte address 0x4 - core index']
  #allocation1 [shape = 'u32[144,128]{1,0:T(1,128)}', space=vmem, size = 0x12000, scoped, tag = 'internal scratch']
  %s0 = inlined_call_operand.hbm [shape: f32[1003,128], index: 0, kind: input, shape index: {}]
  %s1 = inlined_call_operand.vmem [shape: f32[1,128], index: 1, kind: input, shape index: {}]
  %s2 = inlined_call_operand.vmem [shape: f32[1,128], index: 2, kind: input, shape index: {}]
  %s3 = inlined_call_operand.hbm [shape: f32[1003,128], index: 3, kind: output, shape index: {}]
  %s4 = sld [smem:[#allocation0]]
  $region26: #{tpu_custom_call.1} parent=0
    _
  %s6 = ssub.s32 1, %s4
  %s7 = scalar_select 0, %s6, %s4
  $region1: #{tpu_custom_call.1} parent=0
    #allocation2 [shape = 'u8[516096]{0}', space=vmem, size = 0x7e000, scoped, tag = 'input window, operand 0, single buffered']
    #allocation3 [shape = 's32[1]{0}', space=sflag, size = 0x4, scoped, tag = 'scoped memory for tpu_custom_call.1']
    #allocation4 [shape = 's32[1]{0}', space=sflag, size = 0x4, scoped, tag = 'scoped memory for tpu_custom_call.1']
    #allocation5 [shape = 'u8[516096]{0}', space=vmem, size = 0x7e000, scoped, tag = 'output window, operand 0, single buffered']
    %8 = vsyncpa [#allocation3], 0
    %9 = vsyncpa [#allocation4], 0
    // Predicated region
    $region2: #{tpu_custom_call.1} parent=1 // pred_check
      _
    $region3: #{tpu_custom_call.1} parent=1 // pred_check_branch
      %11 = sbr.rel (0) target = $region5
    $region4: #{tpu_custom_call.1} parent=1 // pred_region
      %s13 = ssub.s32 16128, 16128
      %14 = vsyncadd [#allocation3], %s13
      %s15 = sshll.u32 [#allocation2], 4
      %s16 = int_to_ptr.vmem [resolvable:$true] %s15
      %21 = dma.hbm_to_vmem [thread:$0]  %s0, 16128, %s16, [#allocation3], 128, 128, 8
    $region5: #{tpu_custom_call.1} parent=1 // pred_fallthru
      _
    // Predicated region
    $region6: #{tpu_custom_call.1} parent=1 // pred_check
      _
    $region7: #{tpu_custom_call.1} parent=1 // pred_check_branch
      %23 = sbr.rel (0) target = $region9
    $region8: #{tpu_custom_call.1} parent=1 // pred_region
      _
    $region9: #{tpu_custom_call.1} parent=1 // pred_fallthru
      _
    // Predicated region
    $region10: #{tpu_custom_call.1} parent=1 // pred_check
      _
    $region11: #{tpu_custom_call.1} parent=1 // pred_check_branch
      %25 = sbr.rel (0) target = $region13
    $region12: #{tpu_custom_call.1} parent=1 // pred_region
      _
    $region13: #{tpu_custom_call.1} parent=1 // pred_fallthru
      _
    // Predicated region
    $region14: #{tpu_custom_call.1} parent=1 // pred_check
      _
    $region15: #{tpu_custom_call.1} parent=1 // pred_check_branch
      %27 = sbr.rel (0) target = $region17
    $region16: #{tpu_custom_call.1} parent=1 // pred_region
      %28 = dma.done [#allocation3], 16128
    $region17: #{tpu_custom_call.1} parent=1 // pred_fallthru
      _
    %v29 = vld [vmem:[#allocation2] sm:$0xff]
    %v30 = vld [vmem:[#allocation2 + $0x8] sm:$0xff]
    %v31 = vld [vmem:[#allocation2 + $0x10] sm:$0xff]
    %v32 = vld [vmem:[#allocation2 + $0x18] sm:$0xff]
    %v33 = vld [vmem:[#allocation2 + $0x20] sm:$0xff]
    %v34 = vld [vmem:[#allocation2 + $0x28] sm:$0xff]
    %v35 = vld [vmem:[#allocation2 + $0x30] sm:$0xff]
    %v36 = vld [vmem:[#allocation2 + $0x38] sm:$0xff]
    %v37 = vld [vmem:[#allocation2 + $0x40] sm:$0xff]
    %v38 = vld [vmem:[#allocation2 + $0x48] sm:$0xff]
    %v39 = vld [vmem:[#allocation2 + $0x50] sm:$0xff]
    %v40 = vld [vmem:[#allocation2 + $0x58] sm:$0xff]
    %v41 = vld [vmem:[#allocation2 + $0x60] sm:$0xff]
    %v42 = vld [vmem:[#allocation2 + $0x68] sm:$0xff]
    %v43 = vld [vmem:[#allocation2 + $0x70] sm:$0xff]
    %v44 = vld [vmem:[#allocation2 + $0x78] sm:$0xff]
    %v45 = vld [vmem:[#allocation2 + $0x80] sm:$0xff]
    %v46 = vld [vmem:[#allocation2 + $0x88] sm:$0xff]
    %v47 = vld [vmem:[#allocation2 + $0x90] sm:$0xff]
    %v48 = vld [vmem:[#allocation2 + $0x98] sm:$0xff]
    %v49 = vld [vmem:[#allocation2 + $0xa0] sm:$0xff]
    %v50 = vld [vmem:[#allocation2 + $0xa8] sm:$0xff]
    %v51 = vld [vmem:[#allocation2 + $0xb0] sm:$0xff]
    %v52 = vld [vmem:[#allocation2 + $0xb8] sm:$0xff]
    %v53 = vld [vmem:[#allocation2 + $0xc0] sm:$0xff]
    %v54 = vld [vmem:[#allocation2 + $0xc8] sm:$0xff]
    %v55 = vld [vmem:[#allocation2 + $0xd0] sm:$0xff]
    %v56 = vld [vmem:[#allocation2 + $0xd8] sm:$0xff]
    %v57 = vld [vmem:[#allocation2 + $0xe0] sm:$0xff]
    %v58 = vld [vmem:[#allocation2 + $0xe8] sm:$0xff]
    %v59 = vld [vmem:[#allocation2 + $0xf0] sm:$0xff]
    %v60 = vld [vmem:[#allocation2 + $0xf8] sm:$0xff]
    %v61 = vld [vmem:[#allocation2 + $0x100] sm:$0xff]
    %v62 = vld [vmem:[#allocation2 + $0x108] sm:$0xff]
    %v63 = vld [vmem:[#allocation2 + $0x110] sm:$0xff]
    %v64 = vld [vmem:[#allocation2 + $0x118] sm:$0xff]
    %v65 = vld [vmem:[#allocation2 + $0x120] sm:$0xff]
    %v66 = vld [vmem:[#allocation2 + $0x128] sm:$0xff]
    %v67 = vld [vmem:[#allocation2 + $0x130] sm:$0xff]
    %v68 = vld [vmem:[#allocation2 + $0x138] sm:$0xff]
    %v69 = vld [vmem:[#allocation2 + $0x140] sm:$0xff]
    %v70 = vld [vmem:[#allocation2 + $0x148] sm:$0xff]
    %v71 = vld [vmem:[#allocation2 + $0x150] sm:$0xff]
    %v72 = vld [vmem:[#allocation2 + $0x158] sm:$0xff]
    %v73 = vld [vmem:[#allocation2 + $0x160] sm:$0xff]
    %v74 = vld [vmem:[#allocation2 + $0x168] sm:$0xff]
    %v75 = vld [vmem:[#allocation2 + $0x170] sm:$0xff]
    %v76 = vld [vmem:[#allocation2 + $0x178] sm:$0xff]
    %v77 = vld [vmem:[#allocation2 + $0x180] sm:$0xff]
    %v78 = vld [vmem:[#allocation2 + $0x188] sm:$0xff]
    %v79 = vld [vmem:[#allocation2 + $0x190] sm:$0xff]
    %v80 = vld [vmem:[#allocation2 + $0x198] sm:$0xff]
    %v81 = vld [vmem:[#allocation2 + $0x1a0] sm:$0xff]
    %v82 = vld [vmem:[#allocation2 + $0x1a8] sm:$0xff]
    %v83 = vld [vmem:[#allocation2 + $0x1b0] sm:$0xff]
    %v84 = vld [vmem:[#allocation2 + $0x1b8] sm:$0xff]
    %v85 = vld [vmem:[#allocation2 + $0x1c0] sm:$0xff]
    %v86 = vld [vmem:[#allocation2 + $0x1c8] sm:$0xff]
    %v87 = vld [vmem:[#allocation2 + $0x1d0] sm:$0xff]
    %v88 = vld [vmem:[#allocation2 + $0x1d8] sm:$0xff]
    %v89 = vld [vmem:[#allocation2 + $0x1e0] sm:$0xff]
    %v90 = vld [vmem:[#allocation2 + $0x1e8] sm:$0xff]
    %v91 = vld [vmem:[#allocation2 + $0x1f0] sm:$0xff]
    %v92 = vld [vmem:[#allocation2 + $0x1f8] sm:$0xff]
    %v93 = vld [vmem:[#allocation2 + $0x200] sm:$0xff]
    %v94 = vld [vmem:[#allocation2 + $0x208] sm:$0xff]
    %v95 = vld [vmem:[#allocation2 + $0x210] sm:$0xff]
    %v96 = vld [vmem:[#allocation2 + $0x218] sm:$0xff]
    %v97 = vld [vmem:[#allocation2 + $0x220] sm:$0xff]
    %v98 = vld [vmem:[#allocation2 + $0x228] sm:$0xff]
    %v99 = vld [vmem:[#allocation2 + $0x230] sm:$0xff]
    %v100 = vld [vmem:[#allocation2 + $0x238] sm:$0xff]
    %v101 = vld [vmem:[#allocation2 + $0x240] sm:$0xff]
    %v102 = vld [vmem:[#allocation2 + $0x248] sm:$0xff]
    %v103 = vld [vmem:[#allocation2 + $0x250] sm:$0xff]
    %v104 = vld [vmem:[#allocation2 + $0x258] sm:$0xff]
    %v105 = vld [vmem:[#allocation2 + $0x260] sm:$0xff]
    %v106 = vld [vmem:[#allocation2 + $0x268] sm:$0xff]
    %v107 = vld [vmem:[#allocation2 + $0x270] sm:$0xff]
    %v108 = vld [vmem:[#allocation2 + $0x278] sm:$0xff]
    %v109 = vld [vmem:[#allocation2 + $0x280] sm:$0xff]
    %v110 = vld [vmem:[#allocation2 + $0x288] sm:$0xff]
    %v111 = vld [vmem:[#allocation2 + $0x290] sm:$0xff]
    %v112 = vld [vmem:[#allocation2 + $0x298] sm:$0xff]
    %v113 = vld [vmem:[#allocation2 + $0x2a0] sm:$0xff]
    %v114 = vld [vmem:[#allocation2 + $0x2a8] sm:$0xff]
    %v115 = vld [vmem:[#allocation2 + $0x2b0] sm:$0xff]
    %v116 = vld [vmem:[#allocation2 + $0x2b8] sm:$0xff]
    %v117 = vld [vmem:[#allocation2 + $0x2c0] sm:$0xff]
    %v118 = vld [vmem:[#allocation2 + $0x2c8] sm:$0xff]
    %v119 = vld [vmem:[#allocation2 + $0x2d0] sm:$0xff]
    %v120 = vld [vmem:[#allocation2 + $0x2d8] sm:$0xff]
    %v121 = vld [vmem:[#allocation2 + $0x2e0] sm:$0xff]
    %v122 = vld [vmem:[#allocation2 + $0x2e8] sm:$0xff]
    %v123 = vld [vmem:[#allocation2 + $0x2f0] sm:$0xff]
    %v124 = vld [vmem:[#allocation2 + $0x2f8] sm:$0xff]
    %v125 = vld [vmem:[#allocation2 + $0x300] sm:$0xff]
    %v126 = vld [vmem:[#allocation2 + $0x308] sm:$0xff]
    %v127 = vld [vmem:[#allocation2 + $0x310] sm:$0xff]
    %v128 = vld [vmem:[#allocation2 + $0x318] sm:$0xff]
    %v129 = vld [vmem:[#allocation2 + $0x320] sm:$0xff]
    %v130 = vld [vmem:[#allocation2 + $0x328] sm:$0xff]
    %v131 = vld [vmem:[#allocation2 + $0x330] sm:$0xff]
    %v132 = vld [vmem:[#allocation2 + $0x338] sm:$0xff]
    %v133 = vld [vmem:[#allocation2 + $0x340] sm:$0xff]
    %v134 = vld [vmem:[#allocation2 + $0x348] sm:$0xff]
    %v135 = vld [vmem:[#allocation2 + $0x350] sm:$0xff]
    %v136 = vld [vmem:[#allocation2 + $0x358] sm:$0xff]
    %v137 = vld [vmem:[#allocation2 + $0x360] sm:$0xff]
    %v138 = vld [vmem:[#allocation2 + $0x368] sm:$0xff]
    %v139 = vld [vmem:[#allocation2 + $0x370] sm:$0xff]
    %v140 = vld [vmem:[#allocation2 + $0x378] sm:$0xff]
    %v141 = vld [vmem:[#allocation2 + $0x380] sm:$0xff]
    %v142 = vld [vmem:[#allocation2 + $0x388] sm:$0xff]
    %v143 = vld [vmem:[#allocation2 + $0x390] sm:$0xff]
    %v144 = vld [vmem:[#allocation2 + $0x398] sm:$0xff]
    %v145 = vld [vmem:[#allocation2 + $0x3a0] sm:$0xff]
    %v146 = vld [vmem:[#allocation2 + $0x3a8] sm:$0xff]
    %v147 = vld [vmem:[#allocation2 + $0x3b0] sm:$0xff]
    %v148 = vld [vmem:[#allocation2 + $0x3b8] sm:$0xff]
    %v149 = vld [vmem:[#allocation2 + $0x3c0] sm:$0xff]
    %v150 = vld [vmem:[#allocation2 + $0x3c8] sm:$0xff]
    %v151 = vld [vmem:[#allocation2 + $0x3d0] sm:$0xff]
    %v152 = vld [vmem:[#allocation2 + $0x3d8] sm:$0xff]
    %v153 = vld [vmem:[#allocation2 + $0x3e0] sm:$0xff]
    %v154 = vld [vmem:[#allocation2 + $0x3e8] sm:$0x7]
    %v155 = vadd.f32 %v29, %v30
    %v156 = vadd.f32 %v155, %v31
    %v157 = vadd.f32 %v156, %v32
    %v158 = vadd.f32 %v157, %v33
    %v159 = vadd.f32 %v158, %v34
    %v160 = vadd.f32 %v159, %v35
    %v161 = vadd.f32 %v160, %v36
    %v162 = vadd.f32 %v161, %v37
    %v163 = vadd.f32 %v162, %v38
    %v164 = vadd.f32 %v163, %v39
    %v165 = vadd.f32 %v164, %v40
    %v166 = vadd.f32 %v165, %v41
    %v167 = vadd.f32 %v166, %v42
    %v168 = vadd.f32 %v167, %v43
    %v169 = vadd.f32 %v168, %v44
    %v170 = vadd.f32 %v169, %v45
    %v171 = vadd.f32 %v170, %v46
    %v172 = vadd.f32 %v171, %v47
    %v173 = vadd.f32 %v172, %v48
    %v174 = vadd.f32 %v173, %v49
    %v175 = vadd.f32 %v174, %v50
    %v176 = vadd.f32 %v175, %v51
    %v177 = vadd.f32 %v176, %v52
    %v178 = vadd.f32 %v177, %v53
    %v179 = vadd.f32 %v178, %v54
    %v180 = vadd.f32 %v179, %v55
    %v181 = vadd.f32 %v180, %v56
    %v182 = vadd.f32 %v181, %v57
    %v183 = vadd.f32 %v182, %v58
    %v184 = vadd.f32 %v183, %v59
    %v185 = vadd.f32 %v184, %v60
    %v186 = vadd.f32 %v185, %v61
    %v187 = vadd.f32 %v186, %v62
    %v188 = vadd.f32 %v187, %v63
    %v189 = vadd.f32 %v188, %v64
    %v190 = vadd.f32 %v189, %v65
    %v191 = vadd.f32 %v190, %v66
    %v192 = vadd.f32 %v191, %v67
    %v193 = vadd.f32 %v192, %v68
    %v194 = vadd.f32 %v193, %v69
    %v195 = vadd.f32 %v194, %v70
    %v196 = vadd.f32 %v195, %v71
    %v197 = vadd.f32 %v196, %v72
    %v198 = vadd.f32 %v197, %v73
    %v199 = vadd.f32 %v198, %v74
    %v200 = vadd.f32 %v199, %v75
    %v201 = vadd.f32 %v200, %v76
    %v202 = vadd.f32 %v201, %v77
    %v203 = vadd.f32 %v202, %v78
    %v204 = vadd.f32 %v203, %v79
    %v205 = vadd.f32 %v204, %v80
    %v206 = vadd.f32 %v205, %v81
    %v207 = vadd.f32 %v206, %v82
    %v208 = vadd.f32 %v207, %v83
    %v209 = vadd.f32 %v208, %v84
    %v210 = vadd.f32 %v209, %v85
    %v211 = vadd.f32 %v210, %v86
    %v212 = vadd.f32 %v211, %v87
    %v213 = vadd.f32 %v212, %v88
    %v214 = vadd.f32 %v213, %v89
    %v215 = vadd.f32 %v214, %v90
    %v216 = vadd.f32 %v215, %v91
    %v217 = vadd.f32 %v216, %v92
    %v218 = vadd.f32 %v217, %v93
    %v219 = vadd.f32 %v218, %v94
    %v220 = vadd.f32 %v219, %v95
    %v221 = vadd.f32 %v220, %v96
    %v222 = vadd.f32 %v221, %v97
    %v223 = vadd.f32 %v222, %v98
    %v224 = vadd.f32 %v223, %v99
    %v225 = vadd.f32 %v224, %v100
    %v226 = vadd.f32 %v225, %v101
    %v227 = vadd.f32 %v226, %v102
    %v228 = vadd.f32 %v227, %v103
    %v229 = vadd.f32 %v228, %v104
    %v230 = vadd.f32 %v229, %v105
    %v231 = vadd.f32 %v230, %v106
    %v232 = vadd.f32 %v231, %v107
    %v233 = vadd.f32 %v232, %v108
    %v234 = vadd.f32 %v233, %v109
    %v235 = vadd.f32 %v234, %v110
    %v236 = vadd.f32 %v235, %v111
    %v237 = vadd.f32 %v236, %v112
    %v238 = vadd.f32 %v237, %v113
    %v239 = vadd.f32 %v238, %v114
    %v240 = vadd.f32 %v239, %v115
    %v241 = vadd.f32 %v240, %v116
    %v242 = vadd.f32 %v241, %v117
    %v243 = vadd.f32 %v242, %v118
    %v244 = vadd.f32 %v243, %v119
    %v245 = vadd.f32 %v244, %v120
    %v246 = vadd.f32 %v245, %v121
    %v247 = vadd.f32 %v246, %v122
    %v248 = vadd.f32 %v247, %v123
    %v249 = vadd.f32 %v248, %v124
    %v250 = vadd.f32 %v249, %v125
    %v251 = vadd.f32 %v250, %v126
    %v252 = vadd.f32 %v251, %v127
    %v253 = vadd.f32 %v252, %v128
    %v254 = vadd.f32 %v253, %v129
    %v255 = vadd.f32 %v254, %v130
    %v256 = vadd.f32 %v255, %v131
    %v257 = vadd.f32 %v256, %v132
    %v258 = vadd.f32 %v257, %v133
    %v259 = vadd.f32 %v258, %v134
    %v260 = vadd.f32 %v259, %v135
    %v261 = vadd.f32 %v260, %v136
    %v262 = vadd.f32 %v261, %v137
    %v263 = vadd.f32 %v262, %v138
    %v264 = vadd.f32 %v263, %v139
    %v265 = vadd.f32 %v264, %v140
    %v266 = vadd.f32 %v265, %v141
    %v267 = vadd.f32 %v266, %v142
    %v268 = vadd.f32 %v267, %v143
    %v269 = vadd.f32 %v268, %v144
    %v270 = vadd.f32 %v269, %v145
    %v271 = vadd.f32 %v270, %v146
    %v272 = vadd.f32 %v271, %v147
    %v273 = vadd.f32 %v272, %v148
    %v274 = vadd.f32 %v273, %v149
    %v275 = vadd.f32 %v274, %v150
    %v276 = vadd.f32 %v275, %v151
    %v277 = vadd.f32 %v276, %v152
    %v278 = vadd.f32 %v277, %v153
    %vm279 = vcmask 1042432
    %v280 = vsel %vm279, %v154, 0.0
    %v281 = vadd.f32 %v278, %v280
    %v282 = vrot.slane %v281, 4
    %v283 = vadd.f32 %v281, %v282
    %v284 = vrot.slane %v283, 2
    %v285 = vadd.f32 %v283, %v284
    %v286 = vrot.slane %v285, 1
    %v287 = vadd.f32 %v285, %v286
    %v288 = vmul.f32 %v287, 0.000997009
    %v289 = vmul.f32 %v29, %v29
    %v290 = vmul.f32 %v30, %v30
    %v291 = vmul.f32 %v31, %v31
    %v292 = vmul.f32 %v32, %v32
    %v293 = vmul.f32 %v33, %v33
    %v294 = vmul.f32 %v34, %v34
    %v295 = vmul.f32 %v35, %v35
    %v296 = vmul.f32 %v36, %v36
    %v297 = vmul.f32 %v37, %v37
    %v298 = vmul.f32 %v38, %v38
    %v299 = vmul.f32 %v39, %v39
    %v300 = vmul.f32 %v40, %v40
    %v301 = vmul.f32 %v41, %v41
    %v302 = vmul.f32 %v42, %v42
    %v303 = vmul.f32 %v43, %v43
    %v304 = vmul.f32 %v44, %v44
    %v305 = vmul.f32 %v45, %v45
    %v306 = vmul.f32 %v46, %v46
    %v307 = vmul.f32 %v47, %v47
    %v308 = vmul.f32 %v48, %v48
    %v309 = vmul.f32 %v49, %v49
    %v310 = vmul.f32 %v50, %v50
    %v311 = vmul.f32 %v51, %v51
    %v312 = vmul.f32 %v52, %v52
    %v313 = vmul.f32 %v53, %v53
    %v314 = vmul.f32 %v54, %v54
    %v315 = vmul.f32 %v55, %v55
    %v316 = vmul.f32 %v56, %v56
    %v317 = vmul.f32 %v57, %v57
    %v318 = vmul.f32 %v58, %v58
    %v319 = vmul.f32 %v59, %v59
    %v320 = vmul.f32 %v60, %v60
    %v321 = vmul.f32 %v61, %v61
    %v322 = vmul.f32 %v62, %v62
    %v323 = vmul.f32 %v63, %v63
    %v324 = vmul.f32 %v64, %v64
    %v325 = vmul.f32 %v65, %v65
    %v326 = vmul.f32 %v66, %v66
    %v327 = vmul.f32 %v67, %v67
    %v328 = vmul.f32 %v68, %v68
    %v329 = vmul.f32 %v69, %v69
    %v330 = vmul.f32 %v70, %v70
    %v331 = vmul.f32 %v71, %v71
    %v332 = vmul.f32 %v72, %v72
    %v333 = vmul.f32 %v73, %v73
    %v334 = vmul.f32 %v74, %v74
    %v335 = vmul.f32 %v75, %v75
    %v336 = vmul.f32 %v76, %v76
    %v337 = vmul.f32 %v77, %v77
    %v338 = vmul.f32 %v78, %v78
    %v339 = vmul.f32 %v79, %v79
    %v340 = vmul.f32 %v80, %v80
    %v341 = vmul.f32 %v81, %v81
    %v342 = vmul.f32 %v82, %v82
    %v343 = vmul.f32 %v83, %v83
    %v344 = vmul.f32 %v84, %v84
    %v345 = vmul.f32 %v85, %v85
    %v346 = vmul.f32 %v86, %v86
    %v347 = vmul.f32 %v87, %v87
    %v348 = vmul.f32 %v88, %v88
    %v349 = vmul.f32 %v89, %v89
    %v350 = vmul.f32 %v90, %v90
    %v351 = vmul.f32 %v91, %v91
    %v352 = vmul.f32 %v92, %v92
    %v353 = vmul.f32 %v93, %v93
    %v354 = vmul.f32 %v94, %v94
    %v355 = vmul.f32 %v95, %v95
    %v356 = vmul.f32 %v96, %v96
    %v357 = vmul.f32 %v97, %v97
    %v358 = vmul.f32 %v98, %v98
    %v359 = vmul.f32 %v99, %v99
    %v360 = vmul.f32 %v100, %v100
    %v361 = vmul.f32 %v101, %v101
    %v362 = vmul.f32 %v102, %v102
    %v363 = vmul.f32 %v103, %v103
    %v364 = vmul.f32 %v104, %v104
    %v365 = vmul.f32 %v105, %v105
    %v366 = vmul.f32 %v106, %v106
    %v367 = vmul.f32 %v107, %v107
    %v368 = vmul.f32 %v108, %v108
    %v369 = vmul.f32 %v109, %v109
    %v370 = vmul.f32 %v110, %v110
    %v371 = vmul.f32 %v111, %v111
    %v372 = vmul.f32 %v112, %v112
    %v373 = vmul.f32 %v113, %v113
    %v374 = vmul.f32 %v114, %v114
    %v375 = vmul.f32 %v115, %v115
    %v376 = vmul.f32 %v116, %v116
    %v377 = vmul.f32 %v117, %v117
    %v378 = vmul.f32 %v118, %v118
    %v379 = vmul.f32 %v119, %v119
    %v380 = vmul.f32 %v120, %v120
    %v381 = vmul.f32 %v121, %v121
    %v382 = vmul.f32 %v122, %v122
    %v383 = vmul.f32 %v123, %v123
    %v384 = vmul.f32 %v124, %v124
    %v385 = vmul.f32 %v125, %v125
    %v386 = vmul.f32 %v126, %v126
    %v387 = vmul.f32 %v127, %v127
    %v388 = vmul.f32 %v128, %v128
    %v389 = vmul.f32 %v129, %v129
    %v390 = vmul.f32 %v130, %v130
    %v391 = vmul.f32 %v131, %v131
    %v392 = vmul.f32 %v132, %v132
    %v393 = vmul.f32 %v133, %v133
    %v394 = vmul.f32 %v134, %v134
    %v395 = vmul.f32 %v135, %v135
    %v396 = vmul.f32 %v136, %v136
    %v397 = vmul.f32 %v137, %v137
    %v398 = vmul.f32 %v138, %v138
    %v399 = vmul.f32 %v139, %v139
    %v400 = vmul.f32 %v140, %v140
    %v401 = vmul.f32 %v141, %v141
    %v402 = vmul.f32 %v142, %v142
    %v403 = vmul.f32 %v143, %v143
    %v404 = vmul.f32 %v144, %v144
    %v405 = vmul.f32 %v145, %v145
    %v406 = vmul.f32 %v146, %v146
    %v407 = vmul.f32 %v147, %v147
    %v408 = vmul.f32 %v148, %v148
    %v409 = vmul.f32 %v149, %v149
    %v410 = vmul.f32 %v150, %v150
    %v411 = vmul.f32 %v151, %v151
    %v412 = vmul.f32 %v152, %v152
    %v413 = vmul.f32 %v153, %v153
    %v414 = vmul.f32 %v154, %v154
    %v415 = vadd.f32 %v289, %v290
    %v416 = vadd.f32 %v415, %v291
    %v417 = vadd.f32 %v416, %v292
    %v418 = vadd.f32 %v417, %v293
    %v419 = vadd.f32 %v418, %v294
    %v420 = vadd.f32 %v419, %v295
    %v421 = vadd.f32 %v420, %v296
    %v422 = vadd.f32 %v421, %v297
    %v423 = vadd.f32 %v422, %v298
    %v424 = vadd.f32 %v423, %v299
    %v425 = vadd.f32 %v424, %v300
    %v426 = vadd.f32 %v425, %v301
    %v427 = vadd.f32 %v426, %v302
    %v428 = vadd.f32 %v427, %v303
    %v429 = vadd.f32 %v428, %v304
    %v430 = vadd.f32 %v429, %v305
    %v431 = vadd.f32 %v430, %v306
    %v432 = vadd.f32 %v431, %v307
    %v433 = vadd.f32 %v432, %v308
    %v434 = vadd.f32 %v433, %v309
    %v435 = vadd.f32 %v434, %v310
    %v436 = vadd.f32 %v435, %v311
    %v437 = vadd.f32 %v436, %v312
    %v438 = vadd.f32 %v437, %v313
    %v439 = vadd.f32 %v438, %v314
    %v440 = vadd.f32 %v439, %v315
    %v441 = vadd.f32 %v440, %v316
    %v442 = vadd.f32 %v441, %v317
    %v443 = vadd.f32 %v442, %v318
    %v444 = vadd.f32 %v443, %v319
    %v445 = vadd.f32 %v444, %v320
    %v446 = vadd.f32 %v445, %v321
    %v447 = vadd.f32 %v446, %v322
    %v448 = vadd.f32 %v447, %v323
    %v449 = vadd.f32 %v448, %v324
    %v450 = vadd.f32 %v449, %v325
    %v451 = vadd.f32 %v450, %v326
    %v452 = vadd.f32 %v451, %v327
    %v453 = vadd.f32 %v452, %v328
    %v454 = vadd.f32 %v453, %v329
    %v455 = vadd.f32 %v454, %v330
    %v456 = vadd.f32 %v455, %v331
    %v457 = vadd.f32 %v456, %v332
    %v458 = vadd.f32 %v457, %v333
    %v459 = vadd.f32 %v458, %v334
    %v460 = vadd.f32 %v459, %v335
    %v461 = vadd.f32 %v460, %v336
    %v462 = vadd.f32 %v461, %v337
    %v463 = vadd.f32 %v462, %v338
    %v464 = vadd.f32 %v463, %v339
    %v465 = vadd.f32 %v464, %v340
    %v466 = vadd.f32 %v465, %v341
    %v467 = vadd.f32 %v466, %v342
    %v468 = vadd.f32 %v467, %v343
    %v469 = vadd.f32 %v468, %v344
    %v470 = vadd.f32 %v469, %v345
    %v471 = vadd.f32 %v470, %v346
    %v472 = vadd.f32 %v471, %v347
    %v473 = vadd.f32 %v472, %v348
    %v474 = vadd.f32 %v473, %v349
    %v475 = vadd.f32 %v474, %v350
    %v476 = vadd.f32 %v475, %v351
    %v477 = vadd.f32 %v476, %v352
    %v478 = vadd.f32 %v477, %v353
    %v479 = vadd.f32 %v478, %v354
    %v480 = vadd.f32 %v479, %v355
    %v481 = vadd.f32 %v480, %v356
    %v482 = vadd.f32 %v481, %v357
    %v483 = vadd.f32 %v482, %v358
    %v484 = vadd.f32 %v483, %v359
    %v485 = vadd.f32 %v484, %v360
    %v486 = vadd.f32 %v485, %v361
    %v487 = vadd.f32 %v486, %v362
    %v488 = vadd.f32 %v487, %v363
    %v489 = vadd.f32 %v488, %v364
    %v490 = vadd.f32 %v489, %v365
    %v491 = vadd.f32 %v490, %v366
    %v492 = vadd.f32 %v491, %v367
    %v493 = vadd.f32 %v492, %v368
    %v494 = vadd.f32 %v493, %v369
    %v495 = vadd.f32 %v494, %v370
    %v496 = vadd.f32 %v495, %v371
    %v497 = vadd.f32 %v496, %v372
    %v498 = vadd.f32 %v497, %v373
    %v499 = vadd.f32 %v498, %v374
    %v500 = vadd.f32 %v499, %v375
    %v501 = vadd.f32 %v500, %v376
    %v502 = vadd.f32 %v501, %v377
    %v503 = vadd.f32 %v502, %v378
    %v504 = vadd.f32 %v503, %v379
    %v505 = vadd.f32 %v504, %v380
    %v506 = vadd.f32 %v505, %v381
    %v507 = vadd.f32 %v506, %v382
    %v508 = vadd.f32 %v507, %v383
    %v509 = vadd.f32 %v508, %v384
    %v510 = vadd.f32 %v509, %v385
    %v511 = vadd.f32 %v510, %v386
    %v512 = vadd.f32 %v511, %v387
    %v513 = vadd.f32 %v512, %v388
    %v514 = vadd.f32 %v513, %v389
    %v515 = vadd.f32 %v514, %v390
    %v516 = vadd.f32 %v515, %v391
    %v517 = vadd.f32 %v516, %v392
    %v518 = vadd.f32 %v517, %v393
    %v519 = vadd.f32 %v518, %v394
    %v520 = vadd.f32 %v519, %v395
    %v521 = vadd.f32 %v520, %v396
    %v522 = vadd.f32 %v521, %v397
    %v523 = vadd.f32 %v522, %v398
    %v524 = vadd.f32 %v523, %v399
    %v525 = vadd.f32 %v524, %v400
    %v526 = vadd.f32 %v525, %v401
    %v527 = vadd.f32 %v526, %v402
    %v528 = vadd.f32 %v527, %v403
    %v529 = vadd.f32 %v528, %v404
    %v530 = vadd.f32 %v529, %v405
    %v531 = vadd.f32 %v530, %v406
    %v532 = vadd.f32 %v531, %v407
    %v533 = vadd.f32 %v532, %v408
    %v534 = vadd.f32 %v533, %v409
    %v535 = vadd.f32 %v534, %v410
    %v536 = vadd.f32 %v535, %v411
    %v537 = vadd.f32 %v536, %v412
    %v538 = vadd.f32 %v537, %v413
    %v539 = vsel %vm279, %v414, 0.0
    %v540 = vadd.f32 %v538, %v539
    %v541 = vrot.slane %v540, 4
    %v542 = vadd.f32 %v540, %v541
    %v543 = vrot.slane %v542, 2
    %v544 = vadd.f32 %v542, %v543
    %v545 = vrot.slane %v544, 1
    %v546 = vadd.f32 %v544, %v545
    %v547 = vmul.f32 %v546, 0.000997009
    %v548 = vmul.f32 %v288, %v288
    %v549 = vsub.f32 %v547, %v548
    %v550 = vmax.f32 %v549, 0.0
    %v551 = vld [vmem:[%s1] sm:$0x1]
    %v552 = vadd.f32 %v550, 1e-05
    %v553 = vrsqrt.pop %v552
    %v554 = vmul.f32 %v551, %v553
    %v555 = vld [vmem:[%s2] sm:$0x1]
    %v556 = vmul.f32 %v288, %v554
    %v557 = vsub.f32 %v555, %v556
    %v559 = vlaneseq
    %v560 = vshrl.u32 %v559, 7
    %v561 = vsub.s32 0, %v560
    %v562 = vrot.slane %v554, %v561
    %v564 = vmul.f32 %v29, %v562
    %v565 = vmul.f32 %v30, %v562
    %v566 = vmul.f32 %v31, %v562
    %v567 = vmul.f32 %v32, %v562
    %v568 = vmul.f32 %v33, %v562
    %v569 = vmul.f32 %v34, %v562
    %v570 = vmul.f32 %v35, %v562
    %v571 = vmul.f32 %v36, %v562
    %v572 = vmul.f32 %v37, %v562
    %v573 = vmul.f32 %v38, %v562
    %v574 = vmul.f32 %v39, %v562
    %v575 = vmul.f32 %v40, %v562
    %v576 = vmul.f32 %v41, %v562
    %v577 = vmul.f32 %v42, %v562
    %v578 = vmul.f32 %v43, %v562
    %v579 = vmul.f32 %v44, %v562
    %v580 = vmul.f32 %v45, %v562
    %v581 = vmul.f32 %v46, %v562
    %v582 = vmul.f32 %v47, %v562
    %v583 = vmul.f32 %v48, %v562
    %v584 = vmul.f32 %v49, %v562
    %v585 = vmul.f32 %v50, %v562
    %v586 = vmul.f32 %v51, %v562
    %v587 = vmul.f32 %v52, %v562
    %v588 = vmul.f32 %v53, %v562
    %v589 = vmul.f32 %v54, %v562
    %v590 = vmul.f32 %v55, %v562
    %v591 = vmul.f32 %v56, %v562
    %v592 = vmul.f32 %v57, %v562
    %v593 = vmul.f32 %v58, %v562
    %v594 = vmul.f32 %v59, %v562
    %v595 = vmul.f32 %v60, %v562
    %v596 = vmul.f32 %v61, %v562
    %v597 = vmul.f32 %v62, %v562
    %v598 = vmul.f32 %v63, %v562
    %v599 = vmul.f32 %v64, %v562
    %v600 = vmul.f32 %v65, %v562
    %v601 = vmul.f32 %v66, %v562
    %v602 = vmul.f32 %v67, %v562
    %v603 = vmul.f32 %v68, %v562
    %v604 = vmul.f32 %v69, %v562
    %v605 = vmul.f32 %v70, %v562
    %v606 = vmul.f32 %v71, %v562
    %v607 = vmul.f32 %v72, %v562
    %v608 = vmul.f32 %v73, %v562
    %v609 = vmul.f32 %v74, %v562
    %v610 = vmul.f32 %v75, %v562
    %v611 = vmul.f32 %v76, %v562
    %v612 = vmul.f32 %v77, %v562
    %v613 = vmul.f32 %v78, %v562
    %v614 = vmul.f32 %v79, %v562
    %v615 = vmul.f32 %v80, %v562
    %v616 = vmul.f32 %v81, %v562
    %v617 = vmul.f32 %v82, %v562
    %v618 = vmul.f32 %v83, %v562
    %v619 = vmul.f32 %v84, %v562
    %v620 = vmul.f32 %v85, %v562
    %v621 = vmul.f32 %v86, %v562
    %v622 = vmul.f32 %v87, %v562
    %v623 = vmul.f32 %v88, %v562
    %v624 = vmul.f32 %v89, %v562
    %v625 = vmul.f32 %v90, %v562
    %v626 = vmul.f32 %v91, %v562
    %v627 = vmul.f32 %v92, %v562
    %v628 = vmul.f32 %v93, %v562
    %v629 = vmul.f32 %v94, %v562
    %v630 = vmul.f32 %v95, %v562
    %v631 = vmul.f32 %v96, %v562
    %v632 = vmul.f32 %v97, %v562
    %v633 = vmul.f32 %v98, %v562
    %v634 = vmul.f32 %v99, %v562
    %v635 = vmul.f32 %v100, %v562
    %v636 = vmul.f32 %v101, %v562
    %v637 = vmul.f32 %v102, %v562
    %v638 = vmul.f32 %v103, %v562
    %v639 = vmul.f32 %v104, %v562
    %v640 = vmul.f32 %v105, %v562
    %v641 = vmul.f32 %v106, %v562
    %v642 = vmul.f32 %v107, %v562
    %v643 = vmul.f32 %v108, %v562
    %v644 = vmul.f32 %v109, %v562
    %v645 = vmul.f32 %v110, %v562
    %v646 = vmul.f32 %v111, %v562
    %v647 = vmul.f32 %v112, %v562
    %v648 = vmul.f32 %v113, %v562
    %v649 = vmul.f32 %v114, %v562
    %v650 = vmul.f32 %v115, %v562
    %v651 = vmul.f32 %v116, %v562
    %v652 = vmul.f32 %v117, %v562
    %v653 = vmul.f32 %v118, %v562
    %v654 = vmul.f32 %v119, %v562
    %v655 = vmul.f32 %v120, %v562
    %v656 = vmul.f32 %v121, %v562
    %v657 = vmul.f32 %v122, %v562
    %v658 = vmul.f32 %v123, %v562
    %v659 = vmul.f32 %v124, %v562
    %v660 = vmul.f32 %v125, %v562
    %v661 = vmul.f32 %v126, %v562
    %v662 = vmul.f32 %v127, %v562
    %v663 = vmul.f32 %v128, %v562
    %v664 = vmul.f32 %v129, %v562
    %v665 = vmul.f32 %v130, %v562
    %v666 = vmul.f32 %v131, %v562
    %v667 = vmul.f32 %v132, %v562
    %v668 = vmul.f32 %v133, %v562
    %v669 = vmul.f32 %v134, %v562
    %v670 = vmul.f32 %v135, %v562
    %v671 = vmul.f32 %v136, %v562
    %v672 = vmul.f32 %v137, %v562
    %v673 = vmul.f32 %v138, %v562
    %v674 = vmul.f32 %v139, %v562
    %v675 = vmul.f32 %v140, %v562
    %v676 = vmul.f32 %v141, %v562
    %v677 = vmul.f32 %v142, %v562
    %v678 = vmul.f32 %v143, %v562
    %v679 = vmul.f32 %v144, %v562
    %v680 = vmul.f32 %v145, %v562
    %v681 = vmul.f32 %v146, %v562
    %v682 = vmul.f32 %v147, %v562
    %v683 = vmul.f32 %v148, %v562
    %v684 = vmul.f32 %v149, %v562
    %v685 = vmul.f32 %v150, %v562
    %v686 = vmul.f32 %v151, %v562
    %v687 = vmul.f32 %v152, %v562
    %v688 = vmul.f32 %v153, %v562
    %v689 = vmul.f32 %v154, %v562
    %v691 = vlaneseq
    %v692 = vshrl.u32 %v691, 7
    %v693 = vsub.s32 0, %v692
    %v694 = vrot.slane %v557, %v693
    %v696 = vadd.f32 %v564, %v694
    %v697 = vadd.f32 %v565, %v694
    %v698 = vadd.f32 %v566, %v694
    %v699 = vadd.f32 %v567, %v694
    %v700 = vadd.f32 %v568, %v694
    %v701 = vadd.f32 %v569, %v694
    %v702 = vadd.f32 %v570, %v694
    %v703 = vadd.f32 %v571, %v694
    %v704 = vadd.f32 %v572, %v694
    %v705 = vadd.f32 %v573, %v694
    %v706 = vadd.f32 %v574, %v694
    %v707 = vadd.f32 %v575, %v694
    %v708 = vadd.f32 %v576, %v694
    %v709 = vadd.f32 %v577, %v694
    %v710 = vadd.f32 %v578, %v694
    %v711 = vadd.f32 %v579, %v694
    %v712 = vadd.f32 %v580, %v694
    %v713 = vadd.f32 %v581, %v694
    %v714 = vadd.f32 %v582, %v694
    %v715 = vadd.f32 %v583, %v694
    %v716 = vadd.f32 %v584, %v694
    %v717 = vadd.f32 %v585, %v694
    %v718 = vadd.f32 %v586, %v694
    %v719 = vadd.f32 %v587, %v694
    %v720 = vadd.f32 %v588, %v694
    %v721 = vadd.f32 %v589, %v694
    %v722 = vadd.f32 %v590, %v694
    %v723 = vadd.f32 %v591, %v694
    %v724 = vadd.f32 %v592, %v694
    %v725 = vadd.f32 %v593, %v694
    %v726 = vadd.f32 %v594, %v694
    %v727 = vadd.f32 %v595, %v694
    %v728 = vadd.f32 %v596, %v694
    %v729 = vadd.f32 %v597, %v694
    %v730 = vadd.f32 %v598, %v694
    %v731 = vadd.f32 %v599, %v694
    %v732 = vadd.f32 %v600, %v694
    %v733 = vadd.f32 %v601, %v694
    %v734 = vadd.f32 %v602, %v694
    %v735 = vadd.f32 %v603, %v694
    %v736 = vadd.f32 %v604, %v694
    %v737 = vadd.f32 %v605, %v694
    %v738 = vadd.f32 %v606, %v694
    %v739 = vadd.f32 %v607, %v694
    %v740 = vadd.f32 %v608, %v694
    %v741 = vadd.f32 %v609, %v694
    %v742 = vadd.f32 %v610, %v694
    %v743 = vadd.f32 %v611, %v694
    %v744 = vadd.f32 %v612, %v694
    %v745 = vadd.f32 %v613, %v694
    %v746 = vadd.f32 %v614, %v694
    %v747 = vadd.f32 %v615, %v694
    %v748 = vadd.f32 %v616, %v694
    %v749 = vadd.f32 %v617, %v694
    %v750 = vadd.f32 %v618, %v694
    %v751 = vadd.f32 %v619, %v694
    %v752 = vadd.f32 %v620, %v694
    %v753 = vadd.f32 %v621, %v694
    %v754 = vadd.f32 %v622, %v694
    %v755 = vadd.f32 %v623, %v694
    %v756 = vadd.f32 %v624, %v694
    %v757 = vadd.f32 %v625, %v694
    %v758 = vadd.f32 %v626, %v694
    %v759 = vadd.f32 %v627, %v694
    %v760 = vadd.f32 %v628, %v694
    %v761 = vadd.f32 %v629, %v694
    %v762 = vadd.f32 %v630, %v694
    %v763 = vadd.f32 %v631, %v694
    %v764 = vadd.f32 %v632, %v694
    %v765 = vadd.f32 %v633, %v694
    %v766 = vadd.f32 %v634, %v694
    %v767 = vadd.f32 %v635, %v694
    %v768 = vadd.f32 %v636, %v694
    %v769 = vadd.f32 %v637, %v694
    %v770 = vadd.f32 %v638, %v694
    %v771 = vadd.f32 %v639, %v694
    %v772 = vadd.f32 %v640, %v694
    %v773 = vadd.f32 %v641, %v694
    %v774 = vadd.f32 %v642, %v694
    %v775 = vadd.f32 %v643, %v694
    %v776 = vadd.f32 %v644, %v694
    %v777 = vadd.f32 %v645, %v694
    %v778 = vadd.f32 %v646, %v694
    %v779 = vadd.f32 %v647, %v694
    %v780 = vadd.f32 %v648, %v694
    %v781 = vadd.f32 %v649, %v694
    %v782 = vadd.f32 %v650, %v694
    %v783 = vadd.f32 %v651, %v694
    %v784 = vadd.f32 %v652, %v694
    %v785 = vadd.f32 %v653, %v694
    %v786 = vadd.f32 %v654, %v694
    %v787 = vadd.f32 %v655, %v694
    %v788 = vadd.f32 %v656, %v694
    %v789 = vadd.f32 %v657, %v694
    %v790 = vadd.f32 %v658, %v694
    %v791 = vadd.f32 %v659, %v694
    %v792 = vadd.f32 %v660, %v694
    %v793 = vadd.f32 %v661, %v694
    %v794 = vadd.f32 %v662, %v694
    %v795 = vadd.f32 %v663, %v694
    %v796 = vadd.f32 %v664, %v694
    %v797 = vadd.f32 %v665, %v694
    %v798 = vadd.f32 %v666, %v694
    %v799 = vadd.f32 %v667, %v694
    %v800 = vadd.f32 %v668, %v694
    %v801 = vadd.f32 %v669, %v694
    %v802 = vadd.f32 %v670, %v694
    %v803 = vadd.f32 %v671, %v694
    %v804 = vadd.f32 %v672, %v694
    %v805 = vadd.f32 %v673, %v694
    %v806 = vadd.f32 %v674, %v694
    %v807 = vadd.f32 %v675, %v694
    %v808 = vadd.f32 %v676, %v694
    %v809 = vadd.f32 %v677, %v694
    %v810 = vadd.f32 %v678, %v694
    %v811 = vadd.f32 %v679, %v694
    %v812 = vadd.f32 %v680, %v694
    %v813 = vadd.f32 %v681, %v694
    %v814 = vadd.f32 %v682, %v694
    %v815 = vadd.f32 %v683, %v694
    %v816 = vadd.f32 %v684, %v694
    %v817 = vadd.f32 %v685, %v694
    %v818 = vadd.f32 %v686, %v694
    %v819 = vadd.f32 %v687, %v694
    %v820 = vadd.f32 %v688, %v694
    %v821 = vadd.f32 %v689, %v694
    %822 = vst [vmem:[#allocation5] sm:$0xff] %v696
    %823 = vst [vmem:[#allocation5 + $0x8] sm:$0xff] %v697
    %824 = vst [vmem:[#allocation5 + $0x10] sm:$0xff] %v698
    %825 = vst [vmem:[#allocation5 + $0x18] sm:$0xff] %v699
    %826 = vst [vmem:[#allocation5 + $0x20] sm:$0xff] %v700
    %827 = vst [vmem:[#allocation5 + $0x28] sm:$0xff] %v701
    %828 = vst [vmem:[#allocation5 + $0x30] sm:$0xff] %v702
    %829 = vst [vmem:[#allocation5 + $0x38] sm:$0xff] %v703
    %830 = vst [vmem:[#allocation5 + $0x40] sm:$0xff] %v704
    %831 = vst [vmem:[#allocation5 + $0x48] sm:$0xff] %v705
    %832 = vst [vmem:[#allocation5 + $0x50] sm:$0xff] %v706
    %833 = vst [vmem:[#allocation5 + $0x58] sm:$0xff] %v707
    %834 = vst [vmem:[#allocation5 + $0x60] sm:$0xff] %v708
    %835 = vst [vmem:[#allocation5 + $0x68] sm:$0xff] %v709
    %836 = vst [vmem:[#allocation5 + $0x70] sm:$0xff] %v710
    %837 = vst [vmem:[#allocation5 + $0x78] sm:$0xff] %v711
    %838 = vst [vmem:[#allocation5 + $0x80] sm:$0xff] %v712
    %839 = vst [vmem:[#allocation5 + $0x88] sm:$0xff] %v713
    %840 = vst [vmem:[#allocation5 + $0x90] sm:$0xff] %v714
    %841 = vst [vmem:[#allocation5 + $0x98] sm:$0xff] %v715
    %842 = vst [vmem:[#allocation5 + $0xa0] sm:$0xff] %v716
    %843 = vst [vmem:[#allocation5 + $0xa8] sm:$0xff] %v717
    %844 = vst [vmem:[#allocation5 + $0xb0] sm:$0xff] %v718
    %845 = vst [vmem:[#allocation5 + $0xb8] sm:$0xff] %v719
    %846 = vst [vmem:[#allocation5 + $0xc0] sm:$0xff] %v720
    %847 = vst [vmem:[#allocation5 + $0xc8] sm:$0xff] %v721
    %848 = vst [vmem:[#allocation5 + $0xd0] sm:$0xff] %v722
    %849 = vst [vmem:[#allocation5 + $0xd8] sm:$0xff] %v723
    %850 = vst [vmem:[#allocation5 + $0xe0] sm:$0xff] %v724
    %851 = vst [vmem:[#allocation5 + $0xe8] sm:$0xff] %v725
    %852 = vst [vmem:[#allocation5 + $0xf0] sm:$0xff] %v726
    %853 = vst [vmem:[#allocation5 + $0xf8] sm:$0xff] %v727
    %854 = vst [vmem:[#allocation5 + $0x100] sm:$0xff] %v728
    %855 = vst [vmem:[#allocation5 + $0x108] sm:$0xff] %v729
    %856 = vst [vmem:[#allocation5 + $0x110] sm:$0xff] %v730
    %857 = vst [vmem:[#allocation5 + $0x118] sm:$0xff] %v731
    %858 = vst [vmem:[#allocation5 + $0x120] sm:$0xff] %v732
    %859 = vst [vmem:[#allocation5 + $0x128] sm:$0xff] %v733
    %860 = vst [vmem:[#allocation5 + $0x130] sm:$0xff] %v734
    %861 = vst [vmem:[#allocation5 + $0x138] sm:$0xff] %v735
    %862 = vst [vmem:[#allocation5 + $0x140] sm:$0xff] %v736
    %863 = vst [vmem:[#allocation5 + $0x148] sm:$0xff] %v737
    %864 = vst [vmem:[#allocation5 + $0x150] sm:$0xff] %v738
    %865 = vst [vmem:[#allocation5 + $0x158] sm:$0xff] %v739
    %866 = vst [vmem:[#allocation5 + $0x160] sm:$0xff] %v740
    %867 = vst [vmem:[#allocation5 + $0x168] sm:$0xff] %v741
    %868 = vst [vmem:[#allocation5 + $0x170] sm:$0xff] %v742
    %869 = vst [vmem:[#allocation5 + $0x178] sm:$0xff] %v743
    %870 = vst [vmem:[#allocation5 + $0x180] sm:$0xff] %v744
    %871 = vst [vmem:[#allocation5 + $0x188] sm:$0xff] %v745
    %872 = vst [vmem:[#allocation5 + $0x190] sm:$0xff] %v746
    %873 = vst [vmem:[#allocation5 + $0x198] sm:$0xff] %v747
    %874 = vst [vmem:[#allocation5 + $0x1a0] sm:$0xff] %v748
    %875 = vst [vmem:[#allocation5 + $0x1a8] sm:$0xff] %v749
    %876 = vst [vmem:[#allocation5 + $0x1b0] sm:$0xff] %v750
    %877 = vst [vmem:[#allocation5 + $0x1b8] sm:$0xff] %v751
    %878 = vst [vmem:[#allocation5 + $0x1c0] sm:$0xff] %v752
    %879 = vst [vmem:[#allocation5 + $0x1c8] sm:$0xff] %v753
    %880 = vst [vmem:[#allocation5 + $0x1d0] sm:$0xff] %v754
    %881 = vst [vmem:[#allocation5 + $0x1d8] sm:$0xff] %v755
    %882 = vst [vmem:[#allocation5 + $0x1e0] sm:$0xff] %v756
    %883 = vst [vmem:[#allocation5 + $0x1e8] sm:$0xff] %v757
    %884 = vst [vmem:[#allocation5 + $0x1f0] sm:$0xff] %v758
    %885 = vst [vmem:[#allocation5 + $0x1f8] sm:$0xff] %v759
    %886 = vst [vmem:[#allocation5 + $0x200] sm:$0xff] %v760
    %887 = vst [vmem:[#allocation5 + $0x208] sm:$0xff] %v761
    %888 = vst [vmem:[#allocation5 + $0x210] sm:$0xff] %v762
    %889 = vst [vmem:[#allocation5 + $0x218] sm:$0xff] %v763
    %890 = vst [vmem:[#allocation5 + $0x220] sm:$0xff] %v764
    %891 = vst [vmem:[#allocation5 + $0x228] sm:$0xff] %v765
    %892 = vst [vmem:[#allocation5 + $0x230] sm:$0xff] %v766
    %893 = vst [vmem:[#allocation5 + $0x238] sm:$0xff] %v767
    %894 = vst [vmem:[#allocation5 + $0x240] sm:$0xff] %v768
    %895 = vst [vmem:[#allocation5 + $0x248] sm:$0xff] %v769
    %896 = vst [vmem:[#allocation5 + $0x250] sm:$0xff] %v770
    %897 = vst [vmem:[#allocation5 + $0x258] sm:$0xff] %v771
    %898 = vst [vmem:[#allocation5 + $0x260] sm:$0xff] %v772
    %899 = vst [vmem:[#allocation5 + $0x268] sm:$0xff] %v773
    %900 = vst [vmem:[#allocation5 + $0x270] sm:$0xff] %v774
    %901 = vst [vmem:[#allocation5 + $0x278] sm:$0xff] %v775
    %902 = vst [vmem:[#allocation5 + $0x280] sm:$0xff] %v776
    %903 = vst [vmem:[#allocation5 + $0x288] sm:$0xff] %v777
    %904 = vst [vmem:[#allocation5 + $0x290] sm:$0xff] %v778
    %905 = vst [vmem:[#allocation5 + $0x298] sm:$0xff] %v779
    %906 = vst [vmem:[#allocation5 + $0x2a0] sm:$0xff] %v780
    %907 = vst [vmem:[#allocation5 + $0x2a8] sm:$0xff] %v781
    %908 = vst [vmem:[#allocation5 + $0x2b0] sm:$0xff] %v782
    %909 = vst [vmem:[#allocation5 + $0x2b8] sm:$0xff] %v783
    %910 = vst [vmem:[#allocation5 + $0x2c0] sm:$0xff] %v784
    %911 = vst [vmem:[#allocation5 + $0x2c8] sm:$0xff] %v785
    %912 = vst [vmem:[#allocation5 + $0x2d0] sm:$0xff] %v786
    %913 = vst [vmem:[#allocation5 + $0x2d8] sm:$0xff] %v787
    %914 = vst [vmem:[#allocation5 + $0x2e0] sm:$0xff] %v788
    %915 = vst [vmem:[#allocation5 + $0x2e8] sm:$0xff] %v789
    %916 = vst [vmem:[#allocation5 + $0x2f0] sm:$0xff] %v790
    %917 = vst [vmem:[#allocation5 + $0x2f8] sm:$0xff] %v791
    %918 = vst [vmem:[#allocation5 + $0x300] sm:$0xff] %v792
    %919 = vst [vmem:[#allocation5 + $0x308] sm:$0xff] %v793
    %920 = vst [vmem:[#allocation5 + $0x310] sm:$0xff] %v794
    %921 = vst [vmem:[#allocation5 + $0x318] sm:$0xff] %v795
    %922 = vst [vmem:[#allocation5 + $0x320] sm:$0xff] %v796
    %923 = vst [vmem:[#allocation5 + $0x328] sm:$0xff] %v797
    %924 = vst [vmem:[#allocation5 + $0x330] sm:$0xff] %v798
    %925 = vst [vmem:[#allocation5 + $0x338] sm:$0xff] %v799
    %926 = vst [vmem:[#allocation5 + $0x340] sm:$0xff] %v800
    %927 = vst [vmem:[#allocation5 + $0x348] sm:$0xff] %v801
    %928 = vst [vmem:[#allocation5 + $0x350] sm:$0xff] %v802
    %929 = vst [vmem:[#allocation5 + $0x358] sm:$0xff] %v803
    %930 = vst [vmem:[#allocation5 + $0x360] sm:$0xff] %v804
    %931 = vst [vmem:[#allocation5 + $0x368] sm:$0xff] %v805
    %932 = vst [vmem:[#allocation5 + $0x370] sm:$0xff] %v806
    %933 = vst [vmem:[#allocation5 + $0x378] sm:$0xff] %v807
    %934 = vst [vmem:[#allocation5 + $0x380] sm:$0xff] %v808
    %935 = vst [vmem:[#allocation5 + $0x388] sm:$0xff] %v809
    %936 = vst [vmem:[#allocation5 + $0x390] sm:$0xff] %v810
    %937 = vst [vmem:[#allocation5 + $0x398] sm:$0xff] %v811
    %938 = vst [vmem:[#allocation5 + $0x3a0] sm:$0xff] %v812
    %939 = vst [vmem:[#allocation5 + $0x3a8] sm:$0xff] %v813
    %940 = vst [vmem:[#allocation5 + $0x3b0] sm:$0xff] %v814
    %941 = vst [vmem:[#allocation5 + $0x3b8] sm:$0xff] %v815
    %942 = vst [vmem:[#allocation5 + $0x3c0] sm:$0xff] %v816
    %943 = vst [vmem:[#allocation5 + $0x3c8] sm:$0xff] %v817
    %944 = vst [vmem:[#allocation5 + $0x3d0] sm:$0xff] %v818
    %945 = vst [vmem:[#allocation5 + $0x3d8] sm:$0xff] %v819
    %946 = vst [vmem:[#allocation5 + $0x3e0] sm:$0xff] %v820
    %947 = vst [vmem:[#allocation5 + $0x3e8] sm:$0x7] %v821
    // Predicated region
    $region18: #{tpu_custom_call.1} parent=1 // pred_check
      _
    $region19: #{tpu_custom_call.1} parent=1 // pred_check_branch
      %949 = sbr.rel (0) target = $region21
    $region20: #{tpu_custom_call.1} parent=1 // pred_region
      %s951 = ssub.s32 16128, 16128
      %952 = vsyncadd [#allocation4], %s951
      %s953 = sshll.u32 [#allocation5], 4
      %s954 = int_to_ptr.vmem [resolvable:$true] %s953
      %959 = dma.vmem_to_hbm [thread:$0]  %s954, 16128, %s3, [#allocation4], 128, 128, 8
    $region21: #{tpu_custom_call.1} parent=1 // pred_fallthru
      _
    // Predicated region
    $region22: #{tpu_custom_call.1} parent=1 // pred_check
      _
    $region23: #{tpu_custom_call.1} parent=1 // pred_check_branch
      %961 = sbr.rel (0) target = $region25
    $region24: #{tpu_custom_call.1} parent=1 // pred_region
      %962 = dma.done [#allocation4], 16128
    $region25: #{tpu_custom_call.1} parent=1 // pred_fallthru
      _
    %963 = vsyncpa [#allocation3], 1
    %964 = vsyncpa [#allocation4], 1

</llo_original>
